<compile_context>
chip_gen: v7x
topology: tpu7x:2x2x1
jax: 0.10.0
libtpu: 0.0.40
codegen_flags: <defaults>
</compile_context>

<pallas_src>
import functools
import math

import jax
import jax.numpy as jnp
from jax import lax
from jax.experimental import pallas as pl
from jax.experimental.pallas import tpu as pltpu


def _sdpa_kernel(*args, scale_inv, epsilon, dropout_rate, training,
                 has_mask, shared_mask):
    if has_mask:
        seed_ref, q_ref, k_ref, v_ref, mask_ref, out_ref, attn_ref = args
    else:
        seed_ref, q_ref, k_ref, v_ref, out_ref, attn_ref = args
        mask_ref = None

    # q_ref: (TB, TQ, D), k_ref/v_ref: (TB, Sk, D)  -- kept in the input dtype.
    q = q_ref[...]
    k = k_ref[...]
    v = v_ref[...]

    # Pre-scale Q by 1/sqrt(embed_dim): TB*TQ*D multiplies instead of TB*TQ*Sk divides.
    q = q * jnp.asarray(scale_inv, dtype=q.dtype)

    # energy = Q @ K^T : contract on D, batch over heads -- no transpose of K needed.
    energy = lax.dot_general(
        q, k,
        dimension_numbers=(((2,), (2,)), ((0,), (0,))),
        preferred_element_type=jnp.float32)                    # (TB, TQ, Sk) f32

    # masked_fill(mask == 0, -epsilon)  (exactly as in the torch module: -1e-10)
    if has_mask:
        m = mask_ref[...]
        if shared_mask:
            m = m[None, :, :]                                  # (1, TQ, Sk) -> broadcast
        energy = jnp.where(m == 0, jnp.float32(-epsilon), energy)

    # Stable softmax over last dim (f32 elementwise math; exact row reciprocal since
    # attn is a user-visible output -- the wide op is a multiply either way).
    mx = jnp.max(energy, axis=-1, keepdims=True)
    e = jnp.exp(energy - mx)
    inv_denom = pl.reciprocal(jnp.sum(e, axis=-1, keepdims=True), approx=False)
    attn = e * inv_denom
    attn_ref[...] = attn.astype(attn_ref.dtype)

    if training and dropout_rate > 0.0:
        # Inverted dropout, matching nn.Dropout(p) in train mode (stochastic).
        step = pl.program_id(0) * pl.num_programs(1) + pl.program_id(1)
        pltpu.prng_seed(seed_ref[0] + step)
        bits = pltpu.bitcast(pltpu.prng_random_bits(attn.shape), jnp.uint32)
        threshold = jnp.uint32(min(int(round(dropout_rate * 2.0 ** 32)), 2 ** 32 - 1))
        keep = bits >= threshold                               # integer compare, no f32 convert
        attn_d = jnp.where(keep, attn * jnp.float32(1.0 / (1.0 - dropout_rate)), 0.0)
    else:
        attn_d = attn

    # weighted = dropout(attn) @ V  -- probabilities cast to V's dtype for the MXU.
    out = lax.dot_general(
        attn_d.astype(v.dtype), v,
        dimension_numbers=(((2,), (1,)), ((0,), (0,))),
        preferred_element_type=jnp.float32)                    # (TB, TQ, D)
    out_ref[...] = out.astype(out_ref.dtype)


def _pick_q_tile(sq, preferred=256):
    """Largest divisor of sq that is <= preferred and a multiple of 8 (or sq itself)."""
    for t in range(min(sq, preferred), 0, -1):
        if sq % t == 0 and (t % 8 == 0 or t == sq):
            return t
    return sq


def _pick_head_block(bh, tq, sk, budget_bytes=2 << 20):
    """How many (b, h) pairs to process per grid step, bounded by the f32 score block size."""
    per_head = max(tq * sk * 4, 1)
    max_tb = max(1, budget_bytes // per_head)
    for t in range(min(bh, max_tb), 0, -1):
        if bh % t == 0:
            return t
    return 1


def scale_dot_product_attention(query, key, value, mask=None, *,
                                embed_dim=256, dropout=0.5, training=False,
                                epsilon=1e-10, seed=0):
    """Pallas implementation of ScaleDotProductAttention.forward.

    query: (B, H, Sq, D), key/value: (B, H, Sk, D), mask broadcastable to (B, H, Sq, Sk).
    Returns (weighted, attention_score) with shapes (B, H, Sq, D) and (B, H, Sq, Sk).
    """
    B, H, Sq, D = query.shape
    Sk = key.shape[-2]
    BH = B * H

    q = query.reshape(BH, Sq, D)
    k = key.reshape(BH, Sk, D)
    v = value.reshape(BH, Sk, D)

    TQ = _pick_q_tile(Sq)
    TB = _pick_head_block(BH, TQ, Sk)
    grid = (BH // TB, Sq // TQ)

    # Mask handling: keep it small.  If it is shared across batch & heads (the common
    # case, e.g. a causal/padding mask), keep it (Sq, Sk) and reuse the block.
    has_mask = mask is not None
    shared_mask = False
    mask_args = ()
    mask_specs = []
    if has_mask:
        m = jnp.asarray(mask)
        while m.ndim < 4:
            m = m[None]
        if m.shape[0] == 1 and m.shape[1] == 1:
            shared_mask = True
            m2 = jnp.broadcast_to(m[0, 0], (Sq, Sk)).astype(jnp.int32)
            mask_args = (m2,)
            mask_specs = [pl.BlockSpec((TQ, Sk), lambda b, i: (i, 0))]        # head-invariant
        else:
            m2 = jnp.broadcast_to(m, (B, H, Sq, Sk)).astype(jnp.int32).reshape(BH, Sq, Sk)
            mask_args = (m2,)
            mask_specs = [pl.BlockSpec((TB, TQ, Sk), lambda b, i: (b, i, 0))]

    seed_arr = jnp.asarray([seed], dtype=jnp.int32)
    scale_inv = 1.0 / math.sqrt(float(embed_dim))

    kernel = functools.partial(
        _sdpa_kernel,
        scale_inv=scale_inv,
        epsilon=float(epsilon),
        dropout_rate=float(dropout),
        training=bool(training),
        has_mask=has_mask,
        shared_mask=shared_mask,
    )

    in_specs = [
        pl.BlockSpec(memory_space=pltpu.MemorySpace.SMEM),            # seed scalar
        pl.BlockSpec((TB, TQ, D), lambda b, i: (b, i, 0)),            # q
        pl.BlockSpec((TB, Sk, D), lambda b, i: (b, 0, 0)),            # k (full Sk per step)
        pl.BlockSpec((TB, Sk, D), lambda b, i: (b, 0, 0)),            # v
    ] + mask_specs

    out_specs = [
        pl.BlockSpec((TB, TQ, D), lambda b, i: (b, i, 0)),            # weighted
        pl.BlockSpec((TB, TQ, Sk), lambda b, i: (b, i, 0)),           # attention_score
    ]
    # TODO(synk): attn last dim (Sk) below 128 lanes still produces masked stores; padding
    # it would change the module's output shape, so it is left at the logical Sk.

    weighted, attn = pl.pallas_call(
        kernel,
        out_shape=(
            jax.ShapeDtypeStruct((BH, Sq, D), query.dtype),
            jax.ShapeDtypeStruct((BH, Sq, Sk), jnp.float32),
        ),
        grid_spec=pltpu.PrefetchScalarGridSpec(
            num_scalar_prefetch=0,
            grid=grid,
            in_specs=in_specs,
            out_specs=out_specs,
        ),
        compiler_params=pltpu.CompilerParams(
            dimension_semantics=("parallel", "parallel"),
            vmem_limit_bytes=48 * 1024 * 1024,
        ),
    )(seed_arr, q, k, v, *mask_args)

    return weighted.reshape(B, H, Sq, D), attn.reshape(B, H, Sq, Sk)


def _reference(query, key, value, mask, embed_dim, epsilon):
    # plain-JAX reference (eval-mode dropout == identity)
    scale = math.sqrt(float(embed_dim))
    energy = jnp.einsum("bhqd,bhkd->bhqk", query.astype(jnp.float32),
                        key.astype(jnp.float32)) / scale
    if mask is not None:
        energy = jnp.where(mask == 0, jnp.float32(-epsilon), energy)
    attn = jax.nn.softmax(energy, axis=-1)
    weighted = jnp.einsum("bhqk,bhkd->bhqd", attn, value.astype(jnp.float32))
    return weighted.astype(query.dtype), attn


if __name__ == "__main__":
    B, H, Sq, Sk, D = 2, 2, 8, 8, 32
    embed_dim = D  # scale by sqrt(head_dim) for this small synthetic config

    rng = jax.random.PRNGKey(0)
    kq, kk, kv, _ = jax.random.split(rng, 4)
    query = jax.random.normal(kq, (B, H, Sq, D), dtype=jnp.float32)
    key = jax.random.normal(kk, (B, H, Sk, D), dtype=jnp.float32)
    value = jax.random.normal(kv, (B, H, Sk, D), dtype=jnp.float32)
    # causal-ish synthetic mask shared across batch/heads (1 = keep, 0 = fill with -epsilon)
    mask = jnp.tril(jnp.ones((Sq, Sk), dtype=jnp.int32))[None, None, :, :]

    # eval mode (dropout is identity, deterministic); training=True exercises in-kernel PRNG dropout
    weighted, attn = scale_dot_product_attention(
        query, key, value, mask, embed_dim=embed_dim, dropout=0.5,
        training=False, epsilon=1e-10, seed=0)
    jax.block_until_ready((weighted, attn))

    ref_w, ref_a = _reference(query, key, value, mask, embed_dim, 1e-10)
    assert jnp.allclose(attn, ref_a, atol=1e-5, rtol=1e-5)
    assert jnp.allclose(weighted, ref_w, atol=1e-5, rtol=1e-5)
    assert bool(jnp.allclose(jnp.sum(attn, axis=-1), 1.0, atol=1e-5))

    # mask=None path (no mask operand is compiled at all)
    w2, a2 = scale_dot_product_attention(
        query, key, value, None, embed_dim=embed_dim, dropout=0.5,
        training=False, epsilon=1e-10, seed=0)
    jax.block_until_ready((w2, a2))
    ref_w2, ref_a2 = _reference(query, key, value, None, embed_dim, 1e-10)
    assert jnp.allclose(a2, ref_a2, atol=1e-5, rtol=1e-5)
    assert jnp.allclose(w2, ref_w2, atol=1e-5, rtol=1e-5)

    print("KERNEL_OK")
</pallas_src>

<mosaic_0001>
module attributes {stable_mosaic.version = 11 : i64} {
  func.func @_sdpa_kernel(%arg0: i32, %arg1: i32, %arg2: memref<1xi32, #tpu.memory_space<smem>>, %arg3: memref<4x8x32xf32, #tpu.memory_space<vmem>>, %arg4: memref<4x8x32xf32, #tpu.memory_space<vmem>>, %arg5: memref<4x8x32xf32, #tpu.memory_space<vmem>>, %arg6: memref<8x8xi32, #tpu.memory_space<vmem>>, %arg7: memref<4x8x32xf32, #tpu.memory_space<vmem>>, %arg8: memref<4x8x8xf32, #tpu.memory_space<vmem>>) attributes {dimension_semantics = [#tpu.dimension_semantics<parallel>, #tpu.dimension_semantics<parallel>], iteration_bounds = array<i64: 1, 1>, scalar_prefetch = 0 : i64, scratch_operands = 0 : i64, tpu.core_type = #tpu.core_type<tc>, window_params = [{transform_indices = @transform_0, window_bounds = array<i64: 1>}, {transform_indices = @transform_1, window_bounds = array<i64: 4, 8, 32>}, {transform_indices = @transform_2, window_bounds = array<i64: 4, 8, 32>}, {transform_indices = @transform_3, window_bounds = array<i64: 4, 8, 32>}, {transform_indices = @transform_4, window_bounds = array<i64: 8, 8>}, {transform_indices = @transform_5, window_bounds = array<i64: 4, 8, 32>}, {transform_indices = @transform_6, window_bounds = array<i64: 4, 8, 8>}]} {
    %c0 = arith.constant 0 : index
    %c0_0 = arith.constant 0 : index
    %c0_1 = arith.constant 0 : index
    %0 = vector.load %arg3[%c0, %c0_0, %c0_1] : memref<4x8x32xf32, #tpu.memory_space<vmem>>, vector<4x8x32xf32>
    %c0_2 = arith.constant 0 : index
    %c0_3 = arith.constant 0 : index
    %c0_4 = arith.constant 0 : index
    %1 = vector.load %arg4[%c0_2, %c0_3, %c0_4] : memref<4x8x32xf32, #tpu.memory_space<vmem>>, vector<4x8x32xf32>
    %c0_5 = arith.constant 0 : index
    %c0_6 = arith.constant 0 : index
    %c0_7 = arith.constant 0 : index
    %2 = vector.load %arg5[%c0_5, %c0_6, %c0_7] : memref<4x8x32xf32, #tpu.memory_space<vmem>>, vector<4x8x32xf32>
    %cst = arith.constant 0.176776692 : f32
    %3 = vector.broadcast %cst : f32 to vector<4x8x32xf32>
    %4 = arith.mulf %0, %3 : vector<4x8x32xf32>
    %cst_8 = arith.constant dense<0.000000e+00> : vector<4x8x8xf32>
    %5 = tpu.matmul %4, %1, %cst_8 {dimension_numbers = #tpu.dot_dimension_numbers<[2], [2], [1], [1], [0, 0, 0, 1, 1, 1], [0], [0]>} : vector<4x8x32xf32>, vector<4x8x32xf32>, vector<4x8x8xf32> -> vector<4x8x8xf32>
    %c0_9 = arith.constant 0 : index
    %c0_10 = arith.constant 0 : index
    %6 = vector.load %arg6[%c0_9, %c0_10] : memref<8x8xi32, #tpu.memory_space<vmem>>, vector<8x8xi32>
    %7 = vector.shape_cast %6 : vector<8x8xi32> to vector<1x8x8xi32>
    %c0_i32 = arith.constant 0 : i32
    %8 = vector.broadcast %c0_i32 : i32 to vector<1x8x8xi32>
    %9 = arith.cmpi eq, %7, %8 : vector<1x8x8xi32>
    %cst_11 = arith.constant -1.000000e-10 : f32
    %10 = vector.shape_cast %9 : vector<1x8x8xi1> to vector<1x8x8xi1>
    %11 = vector.broadcast %10 : vector<1x8x8xi1> to vector<4x8x8xi1>
    %12 = vector.broadcast %cst_11 : f32 to vector<4x8x8xf32>
    %13 = arith.select %11, %12, %5 : vector<4x8x8xi1>, vector<4x8x8xf32>
    %cst_12 = arith.constant dense<0xFF800000> : vector<4x8xf32>
    %14 = vector.multi_reduction <maximumf>, %13, %cst_12 [2] : vector<4x8x8xf32> to vector<4x8xf32>
    %15 = vector.shape_cast %14 : vector<4x8xf32> to vector<4x8x1xf32>
    %16 = vector.broadcast %15 : vector<4x8x1xf32> to vector<4x8x8xf32>
    %17 = arith.subf %13, %16 : vector<4x8x8xf32>
    %18 = math.exp %17 : vector<4x8x8xf32>
    %cst_13 = arith.constant dense<0.000000e+00> : vector<4x8xf32>
    %19 = vector.multi_reduction <add>, %18, %cst_13 [2] : vector<4x8x8xf32> to vector<4x8xf32>
    %20 = vector.shape_cast %19 : vector<4x8xf32> to vector<4x8x1xf32>
    %21 = tpu.reciprocal %20 : vector<4x8x1xf32> -> vector<4x8x1xf32>
    %22 = vector.broadcast %21 : vector<4x8x1xf32> to vector<4x8x8xf32>
    %23 = arith.mulf %18, %22 : vector<4x8x8xf32>
    %c0_14 = arith.constant 0 : index
    %c0_15 = arith.constant 0 : index
    %c0_16 = arith.constant 0 : index
    %24 = vector.load %arg8[%c0_14, %c0_15, %c0_16] : memref<4x8x8xf32, #tpu.memory_space<vmem>>, vector<4x8x8xf32>
    tpu.vector_store %arg8[%c0_14, %c0_15, %c0_16], %23 {strides = array<i32>} : memref<4x8x8xf32, #tpu.memory_space<vmem>>, vector<4x8x8xf32>,
    %cst_17 = arith.constant dense<0.000000e+00> : vector<4x8x32xf32>
    %25 = tpu.matmul %23, %2, %cst_17 {dimension_numbers = #tpu.dot_dimension_numbers<[2], [1], [1], [2], [0, 0, 0, 1, 1, 2], [0], [0]>} : vector<4x8x8xf32>, vector<4x8x32xf32>, vector<4x8x32xf32> -> vector<4x8x32xf32>
    %c0_18 = arith.constant 0 : index
    %c0_19 = arith.constant 0 : index
    %c0_20 = arith.constant 0 : index
    %26 = vector.load %arg7[%c0_18, %c0_19, %c0_20] : memref<4x8x32xf32, #tpu.memory_space<vmem>>, vector<4x8x32xf32>
    tpu.vector_store %arg7[%c0_18, %c0_19, %c0_20], %25 {strides = array<i32>} : memref<4x8x32xf32, #tpu.memory_space<vmem>>, vector<4x8x32xf32>,
    return
  }
  func.func @transform_0(%arg0: i32, %arg1: i32) -> i32 {
    %c0_i32 = arith.constant 0 : i32
    %c0_i32_0 = arith.constant 0 : i32
    return %c0_i32 : i32
  }
  func.func @transform_1(%arg0: i32, %arg1: i32) -> (i32, i32, i32) {
    %c0_i32 = arith.constant 0 : i32
    %c0_i32_0 = arith.constant 0 : i32
    return %arg0, %arg1, %c0_i32 : i32, i32, i32
  }
  func.func @transform_2(%arg0: i32, %arg1: i32) -> (i32, i32, i32) {
    %c0_i32 = arith.constant 0 : i32
    %c0_i32_0 = arith.constant 0 : i32
    %c0_i32_1 = arith.constant 0 : i32
    return %arg0, %c0_i32, %c0_i32_0 : i32, i32, i32
  }
  func.func @transform_3(%arg0: i32, %arg1: i32) -> (i32, i32, i32) {
    %c0_i32 = arith.constant 0 : i32
    %c0_i32_0 = arith.constant 0 : i32
    %c0_i32_1 = arith.constant 0 : i32
    return %arg0, %c0_i32, %c0_i32_0 : i32, i32, i32
  }
  func.func @transform_4(%arg0: i32, %arg1: i32) -> (i32, i32) {
    %c0_i32 = arith.constant 0 : i32
    %c0_i32_0 = arith.constant 0 : i32
    return %arg1, %c0_i32 : i32, i32
  }
  func.func @transform_5(%arg0: i32, %arg1: i32) -> (i32, i32, i32) {
    %c0_i32 = arith.constant 0 : i32
    %c0_i32_0 = arith.constant 0 : i32
    return %arg0, %arg1, %c0_i32 : i32, i32, i32
  }
  func.func @transform_6(%arg0: i32, %arg1: i32) -> (i32, i32, i32) {
    %c0_i32 = arith.constant 0 : i32
    %c0_i32_0 = arith.constant 0 : i32
    return %arg0, %arg1, %c0_i32 : i32, i32, i32
  }
}

</mosaic_0001>

<llo_original>
// kernel: tpu_custom_call.1
$region0: #{tpu_custom_call.1}
  #allocation0 [shape = 'u32[]', space=smem, size = 0x4, offset = 0x4, fixed_abs, tag = 'smem constant byte address 0x4 - core index']
  #allocation1 [shape = 'u32[144,128]{1,0:T(1,128)}', space=vmem, size = 0x12000, scoped, tag = 'internal scratch']
  #allocation2 [shape = 's32[1]{0:T(128)S(6)}', space=smem, size = 0x200, scoped, tag = 'scoped memory for tpu_custom_call.1']
  %s0 = inlined_call_operand.<no memory space> [shape: s32[1], index: 0, kind: input, shape index: {}]
  %s1 = inlined_call_operand.hbm [shape: f32[4,8,32], index: 1, kind: input, shape index: {}]
  %s2 = inlined_call_operand.hbm [shape: f32[4,8,32], index: 2, kind: input, shape index: {}]
  %s3 = inlined_call_operand.hbm [shape: f32[4,8,32], index: 3, kind: input, shape index: {}]
  %s4 = inlined_call_operand.vmem [shape: s32[8,8], index: 4, kind: input, shape index: {}]
  %s5 = inlined_call_operand.hbm [shape: f32[4,8,32], index: 5, kind: output, shape index: {0}]
  %s6 = inlined_call_operand.hbm [shape: f32[4,8,8], index: 6, kind: output, shape index: {1}]
  %7 = xla_tuple %s5, %s6
  %s8 = sld [smem:[#allocation0]]
  $region50: #{tpu_custom_call.1} parent=0
    _
  %s10 = ssub.s32 1, %s8
  %s11 = scalar_select 0, %s10, %s8
  %12 = sst [smem:[#allocation2]] %s0
  $region1: #{tpu_custom_call.1} parent=0
    #allocation3 [shape = 'u8[16384]{0}', space=vmem, size = 0x4000, scoped, tag = 'input window, operand 1, single buffered']
    #allocation4 [shape = 's32[1]{0}', space=sflag, size = 0x4, scoped, tag = 'scoped memory for tpu_custom_call.1']
    #allocation5 [shape = 's32[1]{0}', space=sflag, size = 0x4, scoped, tag = 'scoped memory for tpu_custom_call.1']
    #allocation6 [shape = 'u8[16384]{0}', space=vmem, size = 0x4000, scoped, tag = 'input window, operand 2, single buffered']
    #allocation7 [shape = 's32[1]{0}', space=sflag, size = 0x4, scoped, tag = 'scoped memory for tpu_custom_call.1']
    #allocation8 [shape = 'u8[16384]{0}', space=vmem, size = 0x4000, scoped, tag = 'input window, operand 3, single buffered']
    #allocation9 [shape = 'u8[16384]{0}', space=vmem, size = 0x4000, scoped, tag = 'output window, operand 0, single buffered']
    #allocation10 [shape = 'u8[16384]{0}', space=vmem, size = 0x4000, scoped, tag = 'output window, operand 1, single buffered']
    #allocation11 [shape = 's32[1]{0}', space=sflag, size = 0x4, scoped, tag = 'scoped memory for tpu_custom_call.1']
    %13 = vsyncpa [#allocation4], 0
    %14 = vsyncpa [#allocation7], 0
    %15 = vsyncpa [#allocation5], 0
    %16 = vsyncpa [#allocation11], 0
    // Predicated region
    $region2: #{tpu_custom_call.1} parent=1 // pred_check
      _
    $region3: #{tpu_custom_call.1} parent=1 // pred_check_branch
      %18 = sbr.rel (0) target = $region5
    $region4: #{tpu_custom_call.1} parent=1 // pred_region
      _
    $region5: #{tpu_custom_call.1} parent=1 // pred_fallthru
      _
    // Predicated region
    $region6: #{tpu_custom_call.1} parent=1 // pred_check
      _
    $region7: #{tpu_custom_call.1} parent=1 // pred_check_branch
      %20 = sbr.rel (0) target = $region9
    $region8: #{tpu_custom_call.1} parent=1 // pred_region
      %s22 = ssub.s32 512, 512
      %23 = vsyncadd [#allocation4], %s22
      %s24 = sshll.u32 [#allocation3], 4
      %s25 = int_to_ptr.vmem [resolvable:$true] %s24
      %30 = dma.hbm_to_vmem [thread:$0]  %s1, 512, %s25, [#allocation4], 128, 128, 8
    $region9: #{tpu_custom_call.1} parent=1 // pred_fallthru
      _
    // Predicated region
    $region10: #{tpu_custom_call.1} parent=1 // pred_check
      _
    $region11: #{tpu_custom_call.1} parent=1 // pred_check_branch
      %32 = sbr.rel (0) target = $region13
    $region12: #{tpu_custom_call.1} parent=1 // pred_region
      %s34 = ssub.s32 512, 512
      %35 = vsyncadd [#allocation7], %s34
      %s36 = sshll.u32 [#allocation6], 4
      %s37 = int_to_ptr.vmem [resolvable:$true] %s36
      %42 = dma.hbm_to_vmem [thread:$0]  %s2, 512, %s37, [#allocation7], 128, 128, 8
    $region13: #{tpu_custom_call.1} parent=1 // pred_fallthru
      _
    // Predicated region
    $region14: #{tpu_custom_call.1} parent=1 // pred_check
      _
    $region15: #{tpu_custom_call.1} parent=1 // pred_check_branch
      %44 = sbr.rel (0) target = $region17
    $region16: #{tpu_custom_call.1} parent=1 // pred_region
      %s46 = ssub.s32 512, 512
      %47 = vsyncadd [#allocation7], %s46
      %s48 = sshll.u32 [#allocation8], 4
      %s49 = int_to_ptr.vmem [resolvable:$true] %s48
      %54 = dma.hbm_to_vmem [thread:$0]  %s3, 512, %s49, [#allocation7], 128, 128, 8
    $region17: #{tpu_custom_call.1} parent=1 // pred_fallthru
      _
    // Predicated region
    $region18: #{tpu_custom_call.1} parent=1 // pred_check
      _
    $region19: #{tpu_custom_call.1} parent=1 // pred_check_branch
      %56 = sbr.rel (0) target = $region21
    $region20: #{tpu_custom_call.1} parent=1 // pred_region
      _
    $region21: #{tpu_custom_call.1} parent=1 // pred_fallthru
      _
    // Predicated region
    $region22: #{tpu_custom_call.1} parent=1 // pred_check
      _
    $region23: #{tpu_custom_call.1} parent=1 // pred_check_branch
      %58 = sbr.rel (0) target = $region25
    $region24: #{tpu_custom_call.1} parent=1 // pred_region
      %59 = dma.done [#allocation4], 512
    $region25: #{tpu_custom_call.1} parent=1 // pred_fallthru
      _
    // Predicated region
    $region26: #{tpu_custom_call.1} parent=1 // pred_check
      _
    $region27: #{tpu_custom_call.1} parent=1 // pred_check_branch
      %61 = sbr.rel (0) target = $region29
    $region28: #{tpu_custom_call.1} parent=1 // pred_region
      %62 = dma.done [#allocation7], 512
    $region29: #{tpu_custom_call.1} parent=1 // pred_fallthru
      _
    // Predicated region
    $region30: #{tpu_custom_call.1} parent=1 // pred_check
      _
    $region31: #{tpu_custom_call.1} parent=1 // pred_check_branch
      %64 = sbr.rel (0) target = $region33
    $region32: #{tpu_custom_call.1} parent=1 // pred_region
      %65 = dma.done [#allocation7], 512
    $region33: #{tpu_custom_call.1} parent=1 // pred_fallthru
      _
    %v66 = vld [vmem:[#allocation3] sm:$0xff]
    %v67 = vld [vmem:[#allocation3 + $0x8] sm:$0xff]
    %v68 = vld [vmem:[#allocation3 + $0x10] sm:$0xff]
    %v69 = vld [vmem:[#allocation3 + $0x18] sm:$0xff]
    %v70 = vld [vmem:[#allocation6] sm:$0xff]
    %v71 = vld [vmem:[#allocation6 + $0x8] sm:$0xff]
    %v72 = vld [vmem:[#allocation6 + $0x10] sm:$0xff]
    %v73 = vld [vmem:[#allocation6 + $0x18] sm:$0xff]
    %v74 = vld [vmem:[#allocation8] sm:$0xff]
    %v75 = vld [vmem:[#allocation8 + $0x8] sm:$0xff]
    %v76 = vld [vmem:[#allocation8 + $0x10] sm:$0xff]
    %v77 = vld [vmem:[#allocation8 + $0x18] sm:$0xff]
    %v78 = vmul.f32 %v66, 0.17677669
    %v79 = vmul.f32 %v67, 0.17677669
    %v80 = vmul.f32 %v68, 0.17677669
    %v81 = vmul.f32 %v69, 0.17677669
    %vm82 = vcmask 261120
    %v84 = vsel %vm82, %v78, 0
    %v87 = vsel %vm82, %v70, 0
    %89 = vmatprep.subr.mxu0 0.0
    %90 = vmatpush1.xpose.msra.mxu0 %v87
    %91 = vmatprep.subr.mxu0 0.0
    %92 = vmatpush1.xpose.msra.mxu0 0.0
    %93 = vmatprep.subr.mxu0 0.0
    %94 = vmatpush1.xpose.msra.mxu0 0.0
    %95 = vmatprep.subr.mxu0 0.0
    %96 = vmatpush1.xpose.msra.mxu0 0.0
    %97 = vmatprep.subr.mxu0 0.0
    %98 = vmatpush1.xpose.msra.mxu0 0.0
    %99 = vmatprep.subr.mxu0 0.0
    %100 = vmatpush1.xpose.msra.mxu0 0.0
    %101 = vmatprep.subr.mxu0 0.0
    %102 = vmatpush1.xpose.msra.mxu0 0.0
    %103 = vmatprep.subr.mxu0 0.0
    %104 = vmatpush1.xpose.msra.mxu0 0.0
    %105 = vmatprep.subr.mxu0 0.0
    %106 = vmatpush1.xpose.msra.mxu0 0.0
    %107 = vmatprep.subr.mxu0 0.0
    %108 = vmatpush1.xpose.msra.mxu0 0.0
    %109 = vmatprep.subr.mxu0 0.0
    %110 = vmatpush1.xpose.msra.mxu0 0.0
    %111 = vmatprep.subr.mxu0 0.0
    %112 = vmatpush1.xpose.msra.mxu0 0.0
    %113 = vmatprep.subr.mxu0 0.0
    %114 = vmatpush1.xpose.msra.mxu0 0.0
    %115 = vmatprep.subr.mxu0 0.0
    %116 = vmatpush1.xpose.msra.mxu0 0.0
    %117 = vmatprep.subr.mxu0 0.0
    %118 = vmatpush1.xpose.msra.mxu0 0.0
    %119 = vmatprep.subr.mxu0 0.0
    %120 = vmatpush1.xpose.msra.mxu0 0.0
    %121 = vmatprep.subr.mxu0 0.0
    %122 = vmatpush1.xpose.msra.mxu0 0.0
    %123 = vmatprep.subr.mxu0 0.0
    %124 = vmatpush1.xpose.msra.mxu0 0.0
    %125 = vmatprep.subr.mxu0 0.0
    %126 = vmatpush1.xpose.msra.mxu0 0.0
    %127 = vmatprep.subr.mxu0 0.0
    %128 = vmatpush1.xpose.msra.mxu0 0.0
    %129 = vmatprep.subr.mxu0 0.0
    %130 = vmatpush1.xpose.msra.mxu0 0.0
    %131 = vmatprep.subr.mxu0 0.0
    %132 = vmatpush1.xpose.msra.mxu0 0.0
    %133 = vmatprep.subr.mxu0 0.0
    %134 = vmatpush1.xpose.msra.mxu0 0.0
    %135 = vmatprep.subr.mxu0 0.0
    %136 = vmatpush1.xpose.msra.mxu0 0.0
    %137 = vmatprep.subr.mxu0 0.0
    %138 = vmatpush1.xpose.msra.mxu0 0.0
    %139 = vmatprep.subr.mxu0 0.0
    %140 = vmatpush1.xpose.msra.mxu0 0.0
    %141 = vmatprep.subr.mxu0 0.0
    %142 = vmatpush1.xpose.msra.mxu0 0.0
    %143 = vmatprep.subr.mxu0 0.0
    %144 = vmatpush1.xpose.msra.mxu0 0.0
    %145 = vmatprep.subr.mxu0 0.0
    %146 = vmatpush1.xpose.msra.mxu0 0.0
    %147 = vmatprep.subr.mxu0 0.0
    %148 = vmatpush1.xpose.msra.mxu0 0.0
    %149 = vmatprep.subr.mxu0 0.0
    %150 = vmatpush1.xpose.msra.mxu0 0.0
    %151 = vmatprep.subr.mxu0 0.0
    %152 = vmatpush1.xpose.msra.mxu0 0.0
    %153 = vmatprep.mubr.f32.mxu0 0.0
    %154 = vmatmul.mubr.f32.gmra.mrb[0].mxu0 %v84
    %v155 = vpop.f32.mrb[0].mxu0
    %v156 = vadd.f32 0.0, %v155
    %v157 = vpop.f32.mrb[0].mxu0
    %158 = vdwg.mxu0
    %v160 = vsel %vm82, %v79, 0
    %v163 = vsel %vm82, %v71, 0
    %165 = vmatprep.subr.mxu0 0.0
    %166 = vmatpush1.xpose.msra.mxu0 %v163
    %167 = vmatprep.subr.mxu0 0.0
    %168 = vmatpush1.xpose.msra.mxu0 0.0
    %169 = vmatprep.subr.mxu0 0.0
    %170 = vmatpush1.xpose.msra.mxu0 0.0
    %171 = vmatprep.subr.mxu0 0.0
    %172 = vmatpush1.xpose.msra.mxu0 0.0
    %173 = vmatprep.subr.mxu0 0.0
    %174 = vmatpush1.xpose.msra.mxu0 0.0
    %175 = vmatprep.subr.mxu0 0.0
    %176 = vmatpush1.xpose.msra.mxu0 0.0
    %177 = vmatprep.subr.mxu0 0.0
    %178 = vmatpush1.xpose.msra.mxu0 0.0
    %179 = vmatprep.subr.mxu0 0.0
    %180 = vmatpush1.xpose.msra.mxu0 0.0
    %181 = vmatprep.subr.mxu0 0.0
    %182 = vmatpush1.xpose.msra.mxu0 0.0
    %183 = vmatprep.subr.mxu0 0.0
    %184 = vmatpush1.xpose.msra.mxu0 0.0
    %185 = vmatprep.subr.mxu0 0.0
    %186 = vmatpush1.xpose.msra.mxu0 0.0
    %187 = vmatprep.subr.mxu0 0.0
    %188 = vmatpush1.xpose.msra.mxu0 0.0
    %189 = vmatprep.subr.mxu0 0.0
    %190 = vmatpush1.xpose.msra.mxu0 0.0
    %191 = vmatprep.subr.mxu0 0.0
    %192 = vmatpush1.xpose.msra.mxu0 0.0
    %193 = vmatprep.subr.mxu0 0.0
    %194 = vmatpush1.xpose.msra.mxu0 0.0
    %195 = vmatprep.subr.mxu0 0.0
    %196 = vmatpush1.xpose.msra.mxu0 0.0
    %197 = vmatprep.subr.mxu0 0.0
    %198 = vmatpush1.xpose.msra.mxu0 0.0
    %199 = vmatprep.subr.mxu0 0.0
    %200 = vmatpush1.xpose.msra.mxu0 0.0
    %201 = vmatprep.subr.mxu0 0.0
    %202 = vmatpush1.xpose.msra.mxu0 0.0
    %203 = vmatprep.subr.mxu0 0.0
    %204 = vmatpush1.xpose.msra.mxu0 0.0
    %205 = vmatprep.subr.mxu0 0.0
    %206 = vmatpush1.xpose.msra.mxu0 0.0
    %207 = vmatprep.subr.mxu0 0.0
    %208 = vmatpush1.xpose.msra.mxu0 0.0
    %209 = vmatprep.subr.mxu0 0.0
    %210 = vmatpush1.xpose.msra.mxu0 0.0
    %211 = vmatprep.subr.mxu0 0.0
    %212 = vmatpush1.xpose.msra.mxu0 0.0
    %213 = vmatprep.subr.mxu0 0.0
    %214 = vmatpush1.xpose.msra.mxu0 0.0
    %215 = vmatprep.subr.mxu0 0.0
    %216 = vmatpush1.xpose.msra.mxu0 0.0
    %217 = vmatprep.subr.mxu0 0.0
    %218 = vmatpush1.xpose.msra.mxu0 0.0
    %219 = vmatprep.subr.mxu0 0.0
    %220 = vmatpush1.xpose.msra.mxu0 0.0
    %221 = vmatprep.subr.mxu0 0.0
    %222 = vmatpush1.xpose.msra.mxu0 0.0
    %223 = vmatprep.subr.mxu0 0.0
    %224 = vmatpush1.xpose.msra.mxu0 0.0
    %225 = vmatprep.subr.mxu0 0.0
    %226 = vmatpush1.xpose.msra.mxu0 0.0
    %227 = vmatprep.subr.mxu0 0.0
    %228 = vmatpush1.xpose.msra.mxu0 0.0
    %229 = vmatprep.mubr.f32.mxu0 0.0
    %230 = vmatmul.mubr.f32.gmra.mrb[0].mxu0 %v160
    %v231 = vpop.f32.mrb[0].mxu0
    %v232 = vadd.f32 0.0, %v231
    %v233 = vpop.f32.mrb[0].mxu0
    %234 = vdwg.mxu0
    %v236 = vsel %vm82, %v80, 0
    %v239 = vsel %vm82, %v72, 0
    %241 = vmatprep.subr.mxu0 0.0
    %242 = vmatpush1.xpose.msra.mxu0 %v239
    %243 = vmatprep.subr.mxu0 0.0
    %244 = vmatpush1.xpose.msra.mxu0 0.0
    %245 = vmatprep.subr.mxu0 0.0
    %246 = vmatpush1.xpose.msra.mxu0 0.0
    %247 = vmatprep.subr.mxu0 0.0
    %248 = vmatpush1.xpose.msra.mxu0 0.0
    %249 = vmatprep.subr.mxu0 0.0
    %250 = vmatpush1.xpose.msra.mxu0 0.0
    %251 = vmatprep.subr.mxu0 0.0
    %252 = vmatpush1.xpose.msra.mxu0 0.0
    %253 = vmatprep.subr.mxu0 0.0
    %254 = vmatpush1.xpose.msra.mxu0 0.0
    %255 = vmatprep.subr.mxu0 0.0
    %256 = vmatpush1.xpose.msra.mxu0 0.0
    %257 = vmatprep.subr.mxu0 0.0
    %258 = vmatpush1.xpose.msra.mxu0 0.0
    %259 = vmatprep.subr.mxu0 0.0
    %260 = vmatpush1.xpose.msra.mxu0 0.0
    %261 = vmatprep.subr.mxu0 0.0
    %262 = vmatpush1.xpose.msra.mxu0 0.0
    %263 = vmatprep.subr.mxu0 0.0
    %264 = vmatpush1.xpose.msra.mxu0 0.0
    %265 = vmatprep.subr.mxu0 0.0
    %266 = vmatpush1.xpose.msra.mxu0 0.0
    %267 = vmatprep.subr.mxu0 0.0
    %268 = vmatpush1.xpose.msra.mxu0 0.0
    %269 = vmatprep.subr.mxu0 0.0
    %270 = vmatpush1.xpose.msra.mxu0 0.0
    %271 = vmatprep.subr.mxu0 0.0
    %272 = vmatpush1.xpose.msra.mxu0 0.0
    %273 = vmatprep.subr.mxu0 0.0
    %274 = vmatpush1.xpose.msra.mxu0 0.0
    %275 = vmatprep.subr.mxu0 0.0
    %276 = vmatpush1.xpose.msra.mxu0 0.0
    %277 = vmatprep.subr.mxu0 0.0
    %278 = vmatpush1.xpose.msra.mxu0 0.0
    %279 = vmatprep.subr.mxu0 0.0
    %280 = vmatpush1.xpose.msra.mxu0 0.0
    %281 = vmatprep.subr.mxu0 0.0
    %282 = vmatpush1.xpose.msra.mxu0 0.0
    %283 = vmatprep.subr.mxu0 0.0
    %284 = vmatpush1.xpose.msra.mxu0 0.0
    %285 = vmatprep.subr.mxu0 0.0
    %286 = vmatpush1.xpose.msra.mxu0 0.0
    %287 = vmatprep.subr.mxu0 0.0
    %288 = vmatpush1.xpose.msra.mxu0 0.0
    %289 = vmatprep.subr.mxu0 0.0
    %290 = vmatpush1.xpose.msra.mxu0 0.0
    %291 = vmatprep.subr.mxu0 0.0
    %292 = vmatpush1.xpose.msra.mxu0 0.0
    %293 = vmatprep.subr.mxu0 0.0
    %294 = vmatpush1.xpose.msra.mxu0 0.0
    %295 = vmatprep.subr.mxu0 0.0
    %296 = vmatpush1.xpose.msra.mxu0 0.0
    %297 = vmatprep.subr.mxu0 0.0
    %298 = vmatpush1.xpose.msra.mxu0 0.0
    %299 = vmatprep.subr.mxu0 0.0
    %300 = vmatpush1.xpose.msra.mxu0 0.0
    %301 = vmatprep.subr.mxu0 0.0
    %302 = vmatpush1.xpose.msra.mxu0 0.0
    %303 = vmatprep.subr.mxu0 0.0
    %304 = vmatpush1.xpose.msra.mxu0 0.0
    %305 = vmatprep.mubr.f32.mxu0 0.0
    %306 = vmatmul.mubr.f32.gmra.mrb[0].mxu0 %v236
    %v307 = vpop.f32.mrb[0].mxu0
    %v308 = vadd.f32 0.0, %v307
    %v309 = vpop.f32.mrb[0].mxu0
    %310 = vdwg.mxu0
    %v312 = vsel %vm82, %v81, 0
    %v315 = vsel %vm82, %v73, 0
    %317 = vmatprep.subr.mxu0 0.0
    %318 = vmatpush1.xpose.msra.mxu0 %v315
    %319 = vmatprep.subr.mxu0 0.0
    %320 = vmatpush1.xpose.msra.mxu0 0.0
    %321 = vmatprep.subr.mxu0 0.0
    %322 = vmatpush1.xpose.msra.mxu0 0.0
    %323 = vmatprep.subr.mxu0 0.0
    %324 = vmatpush1.xpose.msra.mxu0 0.0
    %325 = vmatprep.subr.mxu0 0.0
    %326 = vmatpush1.xpose.msra.mxu0 0.0
    %327 = vmatprep.subr.mxu0 0.0
    %328 = vmatpush1.xpose.msra.mxu0 0.0
    %329 = vmatprep.subr.mxu0 0.0
    %330 = vmatpush1.xpose.msra.mxu0 0.0
    %331 = vmatprep.subr.mxu0 0.0
    %332 = vmatpush1.xpose.msra.mxu0 0.0
    %333 = vmatprep.subr.mxu0 0.0
    %334 = vmatpush1.xpose.msra.mxu0 0.0
    %335 = vmatprep.subr.mxu0 0.0
    %336 = vmatpush1.xpose.msra.mxu0 0.0
    %337 = vmatprep.subr.mxu0 0.0
    %338 = vmatpush1.xpose.msra.mxu0 0.0
    %339 = vmatprep.subr.mxu0 0.0
    %340 = vmatpush1.xpose.msra.mxu0 0.0
    %341 = vmatprep.subr.mxu0 0.0
    %342 = vmatpush1.xpose.msra.mxu0 0.0
    %343 = vmatprep.subr.mxu0 0.0
    %344 = vmatpush1.xpose.msra.mxu0 0.0
    %345 = vmatprep.subr.mxu0 0.0
    %346 = vmatpush1.xpose.msra.mxu0 0.0
    %347 = vmatprep.subr.mxu0 0.0
    %348 = vmatpush1.xpose.msra.mxu0 0.0
    %349 = vmatprep.subr.mxu0 0.0
    %350 = vmatpush1.xpose.msra.mxu0 0.0
    %351 = vmatprep.subr.mxu0 0.0
    %352 = vmatpush1.xpose.msra.mxu0 0.0
    %353 = vmatprep.subr.mxu0 0.0
    %354 = vmatpush1.xpose.msra.mxu0 0.0
    %355 = vmatprep.subr.mxu0 0.0
    %356 = vmatpush1.xpose.msra.mxu0 0.0
    %357 = vmatprep.subr.mxu0 0.0
    %358 = vmatpush1.xpose.msra.mxu0 0.0
    %359 = vmatprep.subr.mxu0 0.0
    %360 = vmatpush1.xpose.msra.mxu0 0.0
    %361 = vmatprep.subr.mxu0 0.0
    %362 = vmatpush1.xpose.msra.mxu0 0.0
    %363 = vmatprep.subr.mxu0 0.0
    %364 = vmatpush1.xpose.msra.mxu0 0.0
    %365 = vmatprep.subr.mxu0 0.0
    %366 = vmatpush1.xpose.msra.mxu0 0.0
    %367 = vmatprep.subr.mxu0 0.0
    %368 = vmatpush1.xpose.msra.mxu0 0.0
    %369 = vmatprep.subr.mxu0 0.0
    %370 = vmatpush1.xpose.msra.mxu0 0.0
    %371 = vmatprep.subr.mxu0 0.0
    %372 = vmatpush1.xpose.msra.mxu0 0.0
    %373 = vmatprep.subr.mxu0 0.0
    %374 = vmatpush1.xpose.msra.mxu0 0.0
    %375 = vmatprep.subr.mxu0 0.0
    %376 = vmatpush1.xpose.msra.mxu0 0.0
    %377 = vmatprep.subr.mxu0 0.0
    %378 = vmatpush1.xpose.msra.mxu0 0.0
    %379 = vmatprep.subr.mxu0 0.0
    %380 = vmatpush1.xpose.msra.mxu0 0.0
    %381 = vmatprep.mubr.f32.mxu0 0.0
    %382 = vmatmul.mubr.f32.gmra.mrb[0].mxu0 %v312
    %v383 = vpop.f32.mrb[0].mxu0
    %v384 = vadd.f32 0.0, %v383
    %v385 = vpop.f32.mrb[0].mxu0
    %386 = vdwg.mxu0
    %v387 = vld [vmem:[%s4] sm:$0xff]
    %vm388 = vcmp.eq.s32.totalorder %v387, 0
    %v389 = vsel %vm388, 1, 0
    %vm390 = vcmp.eq.s32.totalorder %v389, 1
    %v391 = vsel %vm390, -1e-10, %v156
    %v392 = vsel %vm390, -1e-10, %v232
    %v393 = vsel %vm390, -1e-10, %v308
    %v394 = vsel %vm390, -1e-10, %v384
    %vm395 = vcmask 64512
    %v396 = vsel %vm395, %v391, -inf
    %397 = vmax.xlane.f32.xlu0 %v396
    %v398 = vpop.xlane.xlu0 %397
    %v399 = vsel %vm395, %v392, -inf
    %400 = vmax.xlane.f32.xlu0 %v399
    %v401 = vpop.xlane.xlu0 %400
    %v402 = vsel %vm395, %v393, -inf
    %403 = vmax.xlane.f32.xlu0 %v402
    %v404 = vpop.xlane.xlu0 %403
    %v405 = vsel %vm395, %v394, -inf
    %406 = vmax.xlane.f32.xlu0 %v405
    %v407 = vpop.xlane.xlu0 %406
    %v408 = vsub.f32 %v391, %v398
    %v409 = vsub.f32 %v392, %v401
    %v410 = vsub.f32 %v393, %v404
    %v411 = vsub.f32 %v394, %v407
    %v412 = vmul.f32 %v408, 1.442695
    %v413 = vpow.pop %v412
    %v414 = vmul.f32 %v409, 1.442695
    %v415 = vpow.pop %v414
    %v416 = vmul.f32 %v410, 1.442695
    %v417 = vpow.pop %v416
    %v418 = vmul.f32 %v411, 1.442695
    %v419 = vpow.pop %v418
    %v420 = vsel %vm395, %v413, 0.0
    %421 = vadd.xlane.f32.xlu0 %v420
    %v422 = vpop.xlane.xlu0 %421
    %v423 = vsel %vm395, %v415, 0.0
    %424 = vadd.xlane.f32.xlu0 %v423
    %v425 = vpop.xlane.xlu0 %424
    %v426 = vsel %vm395, %v417, 0.0
    %427 = vadd.xlane.f32.xlu0 %v426
    %v428 = vpop.xlane.xlu0 %427
    %v429 = vsel %vm395, %v419, 0.0
    %430 = vadd.xlane.f32.xlu0 %v429
    %v431 = vpop.xlane.xlu0 %430
    %v432 = vrcp.pop %v422
    %v433 = vrcp.pop %v425
    %v434 = vrcp.pop %v428
    %v435 = vrcp.pop %v431
    %v436 = vmul.f32 %v413, %v432
    %v437 = vmul.f32 %v415, %v433
    %v438 = vmul.f32 %v417, %v434
    %v439 = vmul.f32 %v419, %v435
    %440 = vst.msk [vmem:[#allocation10] sm:$0xff] %vm395, %v436
    %441 = vst.msk [vmem:[#allocation10 + $0x8] sm:$0xff] %vm395, %v437
    %442 = vst.msk [vmem:[#allocation10 + $0x10] sm:$0xff] %vm395, %v438
    %443 = vst.msk [vmem:[#allocation10 + $0x18] sm:$0xff] %vm395, %v439
    %v445 = vsel %vm395, %v436, 0
    %447 = vmatprep.subr.mxu0 0.0
    %448 = vmatpush1.msra.mxu0 %v74
    %449 = vmatprep.subr.mxu0 0.0
    %450 = vmatpush1.msra.mxu0 0.0
    %451 = vmatprep.subr.mxu0 0.0
    %452 = vmatpush1.msra.mxu0 0.0
    %453 = vmatprep.subr.mxu0 0.0
    %454 = vmatpush1.msra.mxu0 0.0
    %455 = vmatprep.subr.mxu0 0.0
    %456 = vmatpush1.msra.mxu0 0.0
    %457 = vmatprep.subr.mxu0 0.0
    %458 = vmatpush1.msra.mxu0 0.0
    %459 = vmatprep.subr.mxu0 0.0
    %460 = vmatpush1.msra.mxu0 0.0
    %461 = vmatprep.subr.mxu0 0.0
    %462 = vmatpush1.msra.mxu0 0.0
    %463 = vmatprep.subr.mxu0 0.0
    %464 = vmatpush1.msra.mxu0 0.0
    %465 = vmatprep.subr.mxu0 0.0
    %466 = vmatpush1.msra.mxu0 0.0
    %467 = vmatprep.subr.mxu0 0.0
    %468 = vmatpush1.msra.mxu0 0.0
    %469 = vmatprep.subr.mxu0 0.0
    %470 = vmatpush1.msra.mxu0 0.0
    %471 = vmatprep.subr.mxu0 0.0
    %472 = vmatpush1.msra.mxu0 0.0
    %473 = vmatprep.subr.mxu0 0.0
    %474 = vmatpush1.msra.mxu0 0.0
    %475 = vmatprep.subr.mxu0 0.0
    %476 = vmatpush1.msra.mxu0 0.0
    %477 = vmatprep.subr.mxu0 0.0
    %478 = vmatpush1.msra.mxu0 0.0
    %479 = vmatprep.subr.mxu0 0.0
    %480 = vmatpush1.msra.mxu0 0.0
    %481 = vmatprep.subr.mxu0 0.0
    %482 = vmatpush1.msra.mxu0 0.0
    %483 = vmatprep.subr.mxu0 0.0
    %484 = vmatpush1.msra.mxu0 0.0
    %485 = vmatprep.subr.mxu0 0.0
    %486 = vmatpush1.msra.mxu0 0.0
    %487 = vmatprep.subr.mxu0 0.0
    %488 = vmatpush1.msra.mxu0 0.0
    %489 = vmatprep.subr.mxu0 0.0
    %490 = vmatpush1.msra.mxu0 0.0
    %491 = vmatprep.subr.mxu0 0.0
    %492 = vmatpush1.msra.mxu0 0.0
    %493 = vmatprep.subr.mxu0 0.0
    %494 = vmatpush1.msra.mxu0 0.0
    %495 = vmatprep.subr.mxu0 0.0
    %496 = vmatpush1.msra.mxu0 0.0
    %497 = vmatprep.subr.mxu0 0.0
    %498 = vmatpush1.msra.mxu0 0.0
    %499 = vmatprep.subr.mxu0 0.0
    %500 = vmatpush1.msra.mxu0 0.0
    %501 = vmatprep.subr.mxu0 0.0
    %502 = vmatpush1.msra.mxu0 0.0
    %503 = vmatprep.subr.mxu0 0.0
    %504 = vmatpush1.msra.mxu0 0.0
    %505 = vmatprep.subr.mxu0 0.0
    %506 = vmatpush1.msra.mxu0 0.0
    %507 = vmatprep.subr.mxu0 0.0
    %508 = vmatpush1.msra.mxu0 0.0
    %509 = vmatprep.subr.mxu0 0.0
    %510 = vmatpush1.msra.mxu0 0.0
    %511 = vmatprep.mubr.f32.mxu0 0.0
    %512 = vmatmul.mubr.f32.gmra.mrb[0].mxu0 %v445
    %v513 = vpop.f32.mrb[0].mxu0
    %v514 = vadd.f32 0.0, %v513
    %v515 = vpop.f32.mrb[0].mxu0
    %516 = vdwg.mxu0
    %v518 = vsel %vm395, %v437, 0
    %520 = vmatprep.subr.mxu0 0.0
    %521 = vmatpush1.msra.mxu0 %v75
    %522 = vmatprep.subr.mxu0 0.0
    %523 = vmatpush1.msra.mxu0 0.0
    %524 = vmatprep.subr.mxu0 0.0
    %525 = vmatpush1.msra.mxu0 0.0
    %526 = vmatprep.subr.mxu0 0.0
    %527 = vmatpush1.msra.mxu0 0.0
    %528 = vmatprep.subr.mxu0 0.0
    %529 = vmatpush1.msra.mxu0 0.0
    %530 = vmatprep.subr.mxu0 0.0
    %531 = vmatpush1.msra.mxu0 0.0
    %532 = vmatprep.subr.mxu0 0.0
    %533 = vmatpush1.msra.mxu0 0.0
    %534 = vmatprep.subr.mxu0 0.0
    %535 = vmatpush1.msra.mxu0 0.0
    %536 = vmatprep.subr.mxu0 0.0
    %537 = vmatpush1.msra.mxu0 0.0
    %538 = vmatprep.subr.mxu0 0.0
    %539 = vmatpush1.msra.mxu0 0.0
    %540 = vmatprep.subr.mxu0 0.0
    %541 = vmatpush1.msra.mxu0 0.0
    %542 = vmatprep.subr.mxu0 0.0
    %543 = vmatpush1.msra.mxu0 0.0
    %544 = vmatprep.subr.mxu0 0.0
    %545 = vmatpush1.msra.mxu0 0.0
    %546 = vmatprep.subr.mxu0 0.0
    %547 = vmatpush1.msra.mxu0 0.0
    %548 = vmatprep.subr.mxu0 0.0
    %549 = vmatpush1.msra.mxu0 0.0
    %550 = vmatprep.subr.mxu0 0.0
    %551 = vmatpush1.msra.mxu0 0.0
    %552 = vmatprep.subr.mxu0 0.0
    %553 = vmatpush1.msra.mxu0 0.0
    %554 = vmatprep.subr.mxu0 0.0
    %555 = vmatpush1.msra.mxu0 0.0
    %556 = vmatprep.subr.mxu0 0.0
    %557 = vmatpush1.msra.mxu0 0.0
    %558 = vmatprep.subr.mxu0 0.0
    %559 = vmatpush1.msra.mxu0 0.0
    %560 = vmatprep.subr.mxu0 0.0
    %561 = vmatpush1.msra.mxu0 0.0
    %562 = vmatprep.subr.mxu0 0.0
    %563 = vmatpush1.msra.mxu0 0.0
    %564 = vmatprep.subr.mxu0 0.0
    %565 = vmatpush1.msra.mxu0 0.0
    %566 = vmatprep.subr.mxu0 0.0
    %567 = vmatpush1.msra.mxu0 0.0
    %568 = vmatprep.subr.mxu0 0.0
    %569 = vmatpush1.msra.mxu0 0.0
    %570 = vmatprep.subr.mxu0 0.0
    %571 = vmatpush1.msra.mxu0 0.0
    %572 = vmatprep.subr.mxu0 0.0
    %573 = vmatpush1.msra.mxu0 0.0
    %574 = vmatprep.subr.mxu0 0.0
    %575 = vmatpush1.msra.mxu0 0.0
    %576 = vmatprep.subr.mxu0 0.0
    %577 = vmatpush1.msra.mxu0 0.0
    %578 = vmatprep.subr.mxu0 0.0
    %579 = vmatpush1.msra.mxu0 0.0
    %580 = vmatprep.subr.mxu0 0.0
    %581 = vmatpush1.msra.mxu0 0.0
    %582 = vmatprep.subr.mxu0 0.0
    %583 = vmatpush1.msra.mxu0 0.0
    %584 = vmatprep.mubr.f32.mxu0 0.0
    %585 = vmatmul.mubr.f32.gmra.mrb[0].mxu0 %v518
    %v586 = vpop.f32.mrb[0].mxu0
    %v587 = vadd.f32 0.0, %v586
    %v588 = vpop.f32.mrb[0].mxu0
    %589 = vdwg.mxu0
    %v591 = vsel %vm395, %v438, 0
    %593 = vmatprep.subr.mxu0 0.0
    %594 = vmatpush1.msra.mxu0 %v76
    %595 = vmatprep.subr.mxu0 0.0
    %596 = vmatpush1.msra.mxu0 0.0
    %597 = vmatprep.subr.mxu0 0.0
    %598 = vmatpush1.msra.mxu0 0.0
    %599 = vmatprep.subr.mxu0 0.0
    %600 = vmatpush1.msra.mxu0 0.0
    %601 = vmatprep.subr.mxu0 0.0
    %602 = vmatpush1.msra.mxu0 0.0
    %603 = vmatprep.subr.mxu0 0.0
    %604 = vmatpush1.msra.mxu0 0.0
    %605 = vmatprep.subr.mxu0 0.0
    %606 = vmatpush1.msra.mxu0 0.0
    %607 = vmatprep.subr.mxu0 0.0
    %608 = vmatpush1.msra.mxu0 0.0
    %609 = vmatprep.subr.mxu0 0.0
    %610 = vmatpush1.msra.mxu0 0.0
    %611 = vmatprep.subr.mxu0 0.0
    %612 = vmatpush1.msra.mxu0 0.0
    %613 = vmatprep.subr.mxu0 0.0
    %614 = vmatpush1.msra.mxu0 0.0
    %615 = vmatprep.subr.mxu0 0.0
    %616 = vmatpush1.msra.mxu0 0.0
    %617 = vmatprep.subr.mxu0 0.0
    %618 = vmatpush1.msra.mxu0 0.0
    %619 = vmatprep.subr.mxu0 0.0
    %620 = vmatpush1.msra.mxu0 0.0
    %621 = vmatprep.subr.mxu0 0.0
    %622 = vmatpush1.msra.mxu0 0.0
    %623 = vmatprep.subr.mxu0 0.0
    %624 = vmatpush1.msra.mxu0 0.0
    %625 = vmatprep.subr.mxu0 0.0
    %626 = vmatpush1.msra.mxu0 0.0
    %627 = vmatprep.subr.mxu0 0.0
    %628 = vmatpush1.msra.mxu0 0.0
    %629 = vmatprep.subr.mxu0 0.0
    %630 = vmatpush1.msra.mxu0 0.0
    %631 = vmatprep.subr.mxu0 0.0
    %632 = vmatpush1.msra.mxu0 0.0
    %633 = vmatprep.subr.mxu0 0.0
    %634 = vmatpush1.msra.mxu0 0.0
    %635 = vmatprep.subr.mxu0 0.0
    %636 = vmatpush1.msra.mxu0 0.0
    %637 = vmatprep.subr.mxu0 0.0
    %638 = vmatpush1.msra.mxu0 0.0
    %639 = vmatprep.subr.mxu0 0.0
    %640 = vmatpush1.msra.mxu0 0.0
    %641 = vmatprep.subr.mxu0 0.0
    %642 = vmatpush1.msra.mxu0 0.0
    %643 = vmatprep.subr.mxu0 0.0
    %644 = vmatpush1.msra.mxu0 0.0
    %645 = vmatprep.subr.mxu0 0.0
    %646 = vmatpush1.msra.mxu0 0.0
    %647 = vmatprep.subr.mxu0 0.0
    %648 = vmatpush1.msra.mxu0 0.0
    %649 = vmatprep.subr.mxu0 0.0
    %650 = vmatpush1.msra.mxu0 0.0
    %651 = vmatprep.subr.mxu0 0.0
    %652 = vmatpush1.msra.mxu0 0.0
    %653 = vmatprep.subr.mxu0 0.0
    %654 = vmatpush1.msra.mxu0 0.0
    %655 = vmatprep.subr.mxu0 0.0
    %656 = vmatpush1.msra.mxu0 0.0
    %657 = vmatprep.mubr.f32.mxu0 0.0
    %658 = vmatmul.mubr.f32.gmra.mrb[0].mxu0 %v591
    %v659 = vpop.f32.mrb[0].mxu0
    %v660 = vadd.f32 0.0, %v659
    %v661 = vpop.f32.mrb[0].mxu0
    %662 = vdwg.mxu0
    %v664 = vsel %vm395, %v439, 0
    %666 = vmatprep.subr.mxu0 0.0
    %667 = vmatpush1.msra.mxu0 %v77
    %668 = vmatprep.subr.mxu0 0.0
    %669 = vmatpush1.msra.mxu0 0.0
    %670 = vmatprep.subr.mxu0 0.0
    %671 = vmatpush1.msra.mxu0 0.0
    %672 = vmatprep.subr.mxu0 0.0
    %673 = vmatpush1.msra.mxu0 0.0
    %674 = vmatprep.subr.mxu0 0.0
    %675 = vmatpush1.msra.mxu0 0.0
    %676 = vmatprep.subr.mxu0 0.0
    %677 = vmatpush1.msra.mxu0 0.0
    %678 = vmatprep.subr.mxu0 0.0
    %679 = vmatpush1.msra.mxu0 0.0
    %680 = vmatprep.subr.mxu0 0.0
    %681 = vmatpush1.msra.mxu0 0.0
    %682 = vmatprep.subr.mxu0 0.0
    %683 = vmatpush1.msra.mxu0 0.0
    %684 = vmatprep.subr.mxu0 0.0
    %685 = vmatpush1.msra.mxu0 0.0
    %686 = vmatprep.subr.mxu0 0.0
    %687 = vmatpush1.msra.mxu0 0.0
    %688 = vmatprep.subr.mxu0 0.0
    %689 = vmatpush1.msra.mxu0 0.0
    %690 = vmatprep.subr.mxu0 0.0
    %691 = vmatpush1.msra.mxu0 0.0
    %692 = vmatprep.subr.mxu0 0.0
    %693 = vmatpush1.msra.mxu0 0.0
    %694 = vmatprep.subr.mxu0 0.0
    %695 = vmatpush1.msra.mxu0 0.0
    %696 = vmatprep.subr.mxu0 0.0
    %697 = vmatpush1.msra.mxu0 0.0
    %698 = vmatprep.subr.mxu0 0.0
    %699 = vmatpush1.msra.mxu0 0.0
    %700 = vmatprep.subr.mxu0 0.0
    %701 = vmatpush1.msra.mxu0 0.0
    %702 = vmatprep.subr.mxu0 0.0
    %703 = vmatpush1.msra.mxu0 0.0
    %704 = vmatprep.subr.mxu0 0.0
    %705 = vmatpush1.msra.mxu0 0.0
    %706 = vmatprep.subr.mxu0 0.0
    %707 = vmatpush1.msra.mxu0 0.0
    %708 = vmatprep.subr.mxu0 0.0
    %709 = vmatpush1.msra.mxu0 0.0
    %710 = vmatprep.subr.mxu0 0.0
    %711 = vmatpush1.msra.mxu0 0.0
    %712 = vmatprep.subr.mxu0 0.0
    %713 = vmatpush1.msra.mxu0 0.0
    %714 = vmatprep.subr.mxu0 0.0
    %715 = vmatpush1.msra.mxu0 0.0
    %716 = vmatprep.subr.mxu0 0.0
    %717 = vmatpush1.msra.mxu0 0.0
    %718 = vmatprep.subr.mxu0 0.0
    %719 = vmatpush1.msra.mxu0 0.0
    %720 = vmatprep.subr.mxu0 0.0
    %721 = vmatpush1.msra.mxu0 0.0
    %722 = vmatprep.subr.mxu0 0.0
    %723 = vmatpush1.msra.mxu0 0.0
    %724 = vmatprep.subr.mxu0 0.0
    %725 = vmatpush1.msra.mxu0 0.0
    %726 = vmatprep.subr.mxu0 0.0
    %727 = vmatpush1.msra.mxu0 0.0
    %728 = vmatprep.subr.mxu0 0.0
    %729 = vmatpush1.msra.mxu0 0.0
    %730 = vmatprep.mubr.f32.mxu0 0.0
    %731 = vmatmul.mubr.f32.gmra.mrb[0].mxu0 %v664
    %v732 = vpop.f32.mrb[0].mxu0
    %v733 = vadd.f32 0.0, %v732
    %v734 = vpop.f32.mrb[0].mxu0
    %735 = vdwg.mxu0
    %736 = vst.msk [vmem:[#allocation9] sm:$0xff] %vm82, %v514
    %737 = vst.msk [vmem:[#allocation9 + $0x8] sm:$0xff] %vm82, %v587
    %738 = vst.msk [vmem:[#allocation9 + $0x10] sm:$0xff] %vm82, %v660
    %739 = vst.msk [vmem:[#allocation9 + $0x18] sm:$0xff] %vm82, %v733
    // Predicated region
    $region34: #{tpu_custom_call.1} parent=1 // pred_check
      _
    $region35: #{tpu_custom_call.1} parent=1 // pred_check_branch
      %741 = sbr.rel (0) target = $region37
    $region36: #{tpu_custom_call.1} parent=1 // pred_region
      %s743 = ssub.s32 512, 512
      %744 = vsyncadd [#allocation5], %s743
      %s745 = sshll.u32 [#allocation9], 4
      %s746 = int_to_ptr.vmem [resolvable:$true] %s745
      %751 = dma.vmem_to_hbm [thread:$0]  %s746, 512, %s5, [#allocation5], 128, 128, 8
    $region37: #{tpu_custom_call.1} parent=1 // pred_fallthru
      _
    // Predicated region
    $region38: #{tpu_custom_call.1} parent=1 // pred_check
      _
    $region39: #{tpu_custom_call.1} parent=1 // pred_check_branch
      %753 = sbr.rel (0) target = $region41
    $region40: #{tpu_custom_call.1} parent=1 // pred_region
      %s755 = ssub.s32 512, 512
      %756 = vsyncadd [#allocation11], %s755
      %s757 = sshll.u32 [#allocation10], 4
      %s758 = int_to_ptr.vmem [resolvable:$true] %s757
      %763 = dma.vmem_to_hbm [thread:$0]  %s758, 512, %s6, [#allocation11], 128, 128, 8
    $region41: #{tpu_custom_call.1} parent=1 // pred_fallthru
      _
    // Predicated region
    $region42: #{tpu_custom_call.1} parent=1 // pred_check
      _
    $region43: #{tpu_custom_call.1} parent=1 // pred_check_branch
      %765 = sbr.rel (0) target = $region45
    $region44: #{tpu_custom_call.1} parent=1 // pred_region
      %766 = dma.done [#allocation5], 512
    $region45: #{tpu_custom_call.1} parent=1 // pred_fallthru
      _
    // Predicated region
    $region46: #{tpu_custom_call.1} parent=1 // pred_check
      _
    $region47: #{tpu_custom_call.1} parent=1 // pred_check_branch
      %768 = sbr.rel (0) target = $region49
    $region48: #{tpu_custom_call.1} parent=1 // pred_region
      %769 = dma.done [#allocation11], 512
    $region49: #{tpu_custom_call.1} parent=1 // pred_fallthru
      _
    %770 = vsyncpa [#allocation4], 1
    %771 = vsyncpa [#allocation7], 1
    %772 = vsyncpa [#allocation5], 1
    %773 = vsyncpa [#allocation11], 1

</llo_original>
